<compile_context>
chip_gen: v6e
topology: v6e:2x2x1
jax: 0.10.0
libtpu: 0.0.40
codegen_flags: <defaults>
</compile_context>

<pallas_src>
import jax
import jax.numpy as jnp
from jax import lax
from jax.experimental import pallas as pl
from jax.experimental.pallas import tpu as pltpu

H_PAD = 128  # lane-aligned (vreg-width) hidden size


def encoder_gru_kernel(toks_ref, emb_ref, wx_ref, wh_ref, bx_ref, bhn_ref,
                       h0_ref, out_ref, x_scr, gx_scr):
    """Whole-sequence GRU encoder in a single kernel invocation.

    toks_ref : SMEM (T,) int32       scalar-prefetched token ids
    emb_ref  : VMEM (V, Hp)          lane-padded embedding table (resident)
    wx_ref   : VMEM (Hp, 3*Hp)       input projection, gate cols [r | z | n_i]
    wh_ref   : VMEM (Hp, 3*Hp)       hidden projection, gate cols [r | z | n_h]
    bx_ref   : VMEM (1, 3*Hp) f32    [b_ir+b_hr | b_iz+b_hz | b_in]
    bhn_ref  : VMEM (1, Hp)  f32     b_hn
    h0_ref   : VMEM (1, Hp)  f32     initial hidden (zero padded)
    out_ref  : VMEM (T, Hp)  f32     per-step hidden states (row t = h_{t+1})
    x_scr    : VMEM (T, Hp)          gathered embeddings (param dtype)
    gx_scr   : VMEM (T, 3*Hp) f32    hoisted input-gate pre-activations
    """
    T = out_ref.shape[0]
    hp = h0_ref.shape[-1]
    V = emb_ref.shape[0]
    unroll = True if T <= 16 else 8

    # ---- phase 1: gather embeddings for all tokens (off the serial path) ----
    def gather(t, carry):
        tok = jnp.clip(toks_ref[t], 0, V - 1)          # no silent OOB reads
        x_scr[pl.ds(t, 1), :] = emb_ref[pl.ds(tok, 1), :]
        return carry

    lax.fori_loop(0, T, gather, 0, unroll=unroll)

    # ---- phase 2: one batched MXU matmul for the whole input projection -----
    gx_scr[...] = jnp.dot(x_scr[...], wx_ref[...],
                          preferred_element_type=jnp.float32) + bx_ref[...]

    # ---- phase 3: serial recurrence — only h @ W_h + gates on the crit path -
    w_h = wh_ref[...]
    b_hn = bhn_ref[...]

    def step(t, h):
        gx = gx_scr[pl.ds(t, 1), :]
        gh = jnp.dot(h.astype(w_h.dtype), w_h,
                     preferred_element_type=jnp.float32)
        r = jax.nn.sigmoid(gx[:, 0 * hp:1 * hp] + gh[:, 0 * hp:1 * hp])
        z = jax.nn.sigmoid(gx[:, 1 * hp:2 * hp] + gh[:, 1 * hp:2 * hp])
        n = jnp.tanh(gx[:, 2 * hp:3 * hp] + r * (gh[:, 2 * hp:3 * hp] + b_hn))
        new_h = n + z * (h - n)                         # == (1 - z) * n + z * h
        out_ref[pl.ds(t, 1), :] = new_h
        return new_h

    lax.fori_loop(0, T, step, h0_ref[...], unroll=unroll)


class EncoderRNNPallas:
    """JAX/Pallas port of the PyTorch EncoderRNN (nn.Embedding + nn.GRU)."""

    def __init__(self, input_size, hidden_size, key, param_dtype=jnp.bfloat16):
        H, Hp = hidden_size, H_PAD
        assert H <= Hp
        self.hidden_size = H
        self.Hp = Hp
        self.vocab = input_size
        self.param_dtype = param_dtype

        k_emb, k_wih, k_whh, k_bih, k_bhh = jax.random.split(key, 5)
        bound = 1.0 / jnp.sqrt(jnp.float32(H))
        # Raw parameters in PyTorch layout (also used by the pure-JAX reference).
        self.embedding = jax.random.normal(k_emb, (input_size, H), jnp.float32)
        self.w_ih = jax.random.uniform(k_wih, (3 * H, H), jnp.float32, -bound, bound)
        self.w_hh = jax.random.uniform(k_whh, (3 * H, H), jnp.float32, -bound, bound)
        self.b_ih = jax.random.uniform(k_bih, (3 * H,), jnp.float32, -bound, bound)
        self.b_hh = jax.random.uniform(k_bhh, (3 * H,), jnp.float32, -bound, bound)

        # ---- one-time layout plumbing (off the hot path) ---------------------
        # Dense 2-D, lane-padded embedding table (V, Hp).
        self.emb_pad = (jnp.zeros((input_size, Hp), jnp.float32)
                        .at[:, :H].set(self.embedding)).astype(param_dtype)

        # Input projection W_x (Hp, 3*Hp), gate cols [r | z | n_i].
        Wx = jnp.zeros((Hp, 3 * Hp), jnp.float32)
        Wx = Wx.at[:H, 0 * Hp:0 * Hp + H].set(self.w_ih[0:H].T)
        Wx = Wx.at[:H, 1 * Hp:1 * Hp + H].set(self.w_ih[H:2 * H].T)
        Wx = Wx.at[:H, 2 * Hp:2 * Hp + H].set(self.w_ih[2 * H:3 * H].T)
        self.w_x = Wx.astype(param_dtype)

        # Hidden projection W_h (Hp, 3*Hp), gate cols [r | z | n_h].
        Wh = jnp.zeros((Hp, 3 * Hp), jnp.float32)
        Wh = Wh.at[:H, 0 * Hp:0 * Hp + H].set(self.w_hh[0:H].T)
        Wh = Wh.at[:H, 1 * Hp:1 * Hp + H].set(self.w_hh[H:2 * H].T)
        Wh = Wh.at[:H, 2 * Hp:2 * Hp + H].set(self.w_hh[2 * H:3 * H].T)
        self.w_h = Wh.astype(param_dtype)

        # Biases folded into the hoisted input projection (r/z biases combined);
        # only b_hn must be applied inside the recurrence (it is gated by r).
        bx = jnp.zeros((1, 3 * Hp), jnp.float32)
        bx = bx.at[0, 0 * Hp:0 * Hp + H].set(self.b_ih[0:H] + self.b_hh[0:H])
        bx = bx.at[0, 1 * Hp:1 * Hp + H].set(self.b_ih[H:2 * H] + self.b_hh[H:2 * H])
        bx = bx.at[0, 2 * Hp:2 * Hp + H].set(self.b_ih[2 * H:3 * H])
        self.b_x = bx
        self.b_hn = (jnp.zeros((1, Hp), jnp.float32)
                     .at[0, :H].set(self.b_hh[2 * H:3 * H]))

        # TODO(synk): for large vocabularies keep the embedding table in HBM
        # (BlockSpec(memory_space=pl.ANY)) and double-buffer per-token row DMAs
        # instead of making it VMEM-resident (v7x has only 64 MiB VMEM).
        # TODO(synk): if multiple sequences are available, add a batch axis
        # (B >= 8) carried as (B, Hp) and mark it "parallel" so v7x's second
        # TensorCore takes half the batch.

    def init_hidden(self):
        return jnp.zeros((1, 1, self.hidden_size), jnp.float32)

    def encode(self, tokens, hidden):
        """Run the GRU over a whole token sequence in ONE pallas_call.

        tokens: (T,) int.  hidden: (1, 1, H) f32.
        Returns (outputs (T, 1, H), hidden (1, 1, H)) — nn.GRU layout.
        """
        H, Hp, V = self.hidden_size, self.Hp, self.vocab
        T = tokens.shape[0]
        tokens = tokens.astype(jnp.int32)
        h0 = jnp.zeros((1, Hp), jnp.float32).at[:, :H].set(hidden.reshape(1, H))

        grid_spec = pltpu.PrefetchScalarGridSpec(
            num_scalar_prefetch=1,             # token ids -> SMEM
            grid=(1,),                         # single invocation; time loops in-kernel
            in_specs=[
                pl.BlockSpec((V, Hp), lambda i, toks: (0, 0)),
                pl.BlockSpec((Hp, 3 * Hp), lambda i, toks: (0, 0)),
                pl.BlockSpec((Hp, 3 * Hp), lambda i, toks: (0, 0)),
                pl.BlockSpec((1, 3 * Hp), lambda i, toks: (0, 0)),
                pl.BlockSpec((1, Hp), lambda i, toks: (0, 0)),
                pl.BlockSpec((1, Hp), lambda i, toks: (0, 0)),
            ],
            out_specs=pl.BlockSpec((T, Hp), lambda i, toks: (0, 0)),
            scratch_shapes=[pltpu.VMEM((T, Hp), self.param_dtype),
                            pltpu.VMEM((T, 3 * Hp), jnp.float32)],
        )

        outs_p = pl.pallas_call(
            encoder_gru_kernel,
            out_shape=jax.ShapeDtypeStruct((T, Hp), jnp.float32),
            grid_spec=grid_spec,
            compiler_params=pltpu.CompilerParams(
                dimension_semantics=("arbitrary",)),
        )(tokens, self.emb_pad, self.w_x, self.w_h, self.b_x, self.b_hn, h0)

        outs = outs_p[:, :H]
        return outs.reshape(T, 1, H), outs[T - 1].reshape(1, 1, H)

    def forward(self, token_idx, hidden):
        """Single-step forward matching the PyTorch module's signature.
        token_idx: scalar int token id.  hidden: (1, 1, H) f32.
        Returns (output, hidden), each (1, 1, H)."""
        tokens = jnp.asarray(token_idx, jnp.int32).reshape((1,))
        outputs, new_hidden = self.encode(tokens, hidden)
        return outputs.reshape(1, 1, self.hidden_size), new_hidden


# ----------------------------- pure-JAX reference -----------------------------
def _gru_step_ref(model, x, h):
    H = model.hidden_size
    gi = x @ model.w_ih.T + model.b_ih
    gh = h @ model.w_hh.T + model.b_hh
    i_r, i_z, i_n = gi[:, :H], gi[:, H:2 * H], gi[:, 2 * H:]
    h_r, h_z, h_n = gh[:, :H], gh[:, H:2 * H], gh[:, 2 * H:]
    r = jax.nn.sigmoid(i_r + h_r)
    z = jax.nn.sigmoid(i_z + h_z)
    n = jnp.tanh(i_n + r * h_n)
    return (1.0 - z) * n + z * h


def _reference_encode(model, tokens, hidden):
    H = model.hidden_size
    h = hidden.reshape(1, H)
    outs = []
    for t in range(tokens.shape[0]):
        x = model.embedding[tokens[t]].reshape(1, H)
        h = _gru_step_ref(model, x, h)
        outs.append(h)
    return jnp.stack(outs, axis=0), h.reshape(1, 1, H)


if __name__ == "__main__":
    key = jax.random.PRNGKey(0)
    input_size = 64     # vocabulary size
    hidden_size = 32
    seq_len = 8

    tokens = jax.random.randint(jax.random.PRNGKey(1), (seq_len,), 0,
                                input_size, dtype=jnp.int32)

    # ---- f32-parameter model: tight-tolerance correctness check -------------
    model = EncoderRNNPallas(input_size, hidden_size, key,
                             param_dtype=jnp.float32)
    hidden0 = model.init_hidden()

    # 1) Single-step forward (exactly the PyTorch EncoderRNN.forward contract).
    out1, hid1 = model.forward(tokens[0], hidden0)
    out1 = jax.block_until_ready(out1)
    hid1 = jax.block_until_ready(hid1)
    ref_h1 = _gru_step_ref(model,
                           model.embedding[tokens[0]].reshape(1, hidden_size),
                           hidden0.reshape(1, hidden_size))
    assert out1.shape == (1, 1, hidden_size)
    assert hid1.shape == (1, 1, hidden_size)
    assert jnp.allclose(out1.reshape(1, hidden_size), ref_h1, atol=1e-5, rtol=1e-5)
    assert jnp.allclose(hid1.reshape(1, hidden_size), ref_h1, atol=1e-5, rtol=1e-5)

    # 2) Fused whole-sequence encode (one pallas_call for all 8 tokens).
    outs, hid_T = model.encode(tokens, hidden0)
    outs = jax.block_until_ready(outs)
    hid_T = jax.block_until_ready(hid_T)
    ref_outs, ref_hT = _reference_encode(model, tokens, hidden0)
    assert outs.shape == (seq_len, 1, hidden_size)
    assert hid_T.shape == (1, 1, hidden_size)
    assert jnp.allclose(outs, ref_outs, atol=1e-5, rtol=1e-5)
    assert jnp.allclose(hid_T, ref_hT, atol=1e-5, rtol=1e-5)

    # ---- default bf16-parameter model (per perf review): gate math stays f32,
    # so only bf16 weight/embedding rounding separates it from the reference.
    model_bf16 = EncoderRNNPallas(input_size, hidden_size, key)
    outs_b, hid_b = model_bf16.encode(tokens, hidden0)
    outs_b = jax.block_until_ready(outs_b)
    hid_b = jax.block_until_ready(hid_b)
    assert jnp.allclose(outs_b, ref_outs, atol=5e-2, rtol=5e-2)
    assert jnp.allclose(hid_b, ref_hT, atol=5e-2, rtol=5e-2)

    print("KERNEL_OK")
</pallas_src>

<mosaic_0001>
module attributes {stable_mosaic.version = 11 : i64} {
  func.func @encoder_gru_kernel(%arg0: i32, %arg1: memref<1xi32, #tpu.memory_space<smem>>, %arg2: memref<64x128xf32, #tpu.memory_space<vmem>>, %arg3: memref<128x384xf32, #tpu.memory_space<vmem>>, %arg4: memref<128x384xf32, #tpu.memory_space<vmem>>, %arg5: memref<1x384xf32, #tpu.memory_space<vmem>>, %arg6: memref<1x128xf32, #tpu.memory_space<vmem>>, %arg7: memref<1x128xf32, #tpu.memory_space<vmem>>, %arg8: memref<1x128xf32, #tpu.memory_space<vmem>>, %arg9: memref<1x128xf32, #tpu.memory_space<vmem>>, %arg10: memref<1x384xf32, #tpu.memory_space<vmem>>) attributes {dimension_semantics = [#tpu.dimension_semantics<arbitrary>], iteration_bounds = array<i64: 1>, scalar_prefetch = 1 : i64, scratch_operands = 2 : i64, tpu.core_type = #tpu.core_type<tc>, window_params = [{pipeline_mode = #tpu.pipeline_mode<synchronous>, transform_indices = @transform_0, window_bounds = array<i64: 64, 128>}, {pipeline_mode = #tpu.pipeline_mode<synchronous>, transform_indices = @transform_1, window_bounds = array<i64: 128, 384>}, {pipeline_mode = #tpu.pipeline_mode<synchronous>, transform_indices = @transform_2, window_bounds = array<i64: 128, 384>}, {pipeline_mode = #tpu.pipeline_mode<synchronous>, transform_indices = @transform_3, window_bounds = array<i64: 1, 384>}, {pipeline_mode = #tpu.pipeline_mode<synchronous>, transform_indices = @transform_4, window_bounds = array<i64: 1, 128>}, {pipeline_mode = #tpu.pipeline_mode<synchronous>, transform_indices = @transform_5, window_bounds = array<i64: 1, 128>}, {pipeline_mode = #tpu.pipeline_mode<synchronous>, transform_indices = @transform_6, window_bounds = array<i64: 1, 128>}]} {
    %c0_i32 = arith.constant 0 : i32
    %0 = arith.index_cast %c0_i32 : i32 to index
    %1 = memref.load %arg1[%0] : memref<1xi32, #tpu.memory_space<smem>>
    %c0_i32_0 = arith.constant 0 : i32
    %c63_i32 = arith.constant 63 : i32
    %2 = arith.maxsi %c0_i32_0, %1 : i32
    %3 = arith.minsi %c63_i32, %2 : i32
    %4 = arith.index_cast %3 : i32 to index
    %c0 = arith.constant 0 : index
    %5 = vector.load %arg2[%4, %c0] : memref<64x128xf32, #tpu.memory_space<vmem>>, vector<1x128xf32>
    %6 = arith.index_cast %c0_i32 : i32 to index
    %c0_1 = arith.constant 0 : index
    %7 = vector.load %arg9[%6, %c0_1] : memref<1x128xf32, #tpu.memory_space<vmem>>, vector<1x128xf32>
    tpu.vector_store %arg9[%6, %c0_1], %5 {strides = array<i32>} : memref<1x128xf32, #tpu.memory_space<vmem>>, vector<1x128xf32>,
    %c1_i32 = arith.constant 1 : i32
    %c0_2 = arith.constant 0 : index
    %c0_3 = arith.constant 0 : index
    %8 = vector.load %arg9[%c0_2, %c0_3] : memref<1x128xf32, #tpu.memory_space<vmem>>, vector<1x128xf32>
    %c0_4 = arith.constant 0 : index
    %c0_5 = arith.constant 0 : index
    %9 = vector.load %arg3[%c0_4, %c0_5] : memref<128x384xf32, #tpu.memory_space<vmem>>, vector<128x384xf32>
    %cst = arith.constant dense<0.000000e+00> : vector<1x384xf32>
    %10 = tpu.matmul %8, %9, %cst {dimension_numbers = #tpu.dot_dimension_numbers<[1], [0], [0], [1], [0, 0, 1, 1], [], []>} : vector<1x128xf32>, vector<128x384xf32>, vector<1x384xf32> -> vector<1x384xf32>
    %c0_6 = arith.constant 0 : index
    %c0_7 = arith.constant 0 : index
    %11 = vector.load %arg5[%c0_6, %c0_7] : memref<1x384xf32, #tpu.memory_space<vmem>>, vector<1x384xf32>
    %12 = arith.addf %10, %11 : vector<1x384xf32>
    %c0_8 = arith.constant 0 : index
    %c0_9 = arith.constant 0 : index
    %13 = vector.load %arg10[%c0_8, %c0_9] : memref<1x384xf32, #tpu.memory_space<vmem>>, vector<1x384xf32>
    tpu.vector_store %arg10[%c0_8, %c0_9], %12 {strides = array<i32>} : memref<1x384xf32, #tpu.memory_space<vmem>>, vector<1x384xf32>,
    %c0_10 = arith.constant 0 : index
    %c0_11 = arith.constant 0 : index
    %14 = vector.load %arg4[%c0_10, %c0_11] : memref<128x384xf32, #tpu.memory_space<vmem>>, vector<128x384xf32>
    %c0_12 = arith.constant 0 : index
    %c0_13 = arith.constant 0 : index
    %15 = vector.load %arg6[%c0_12, %c0_13] : memref<1x128xf32, #tpu.memory_space<vmem>>, vector<1x128xf32>
    %c0_14 = arith.constant 0 : index
    %c0_15 = arith.constant 0 : index
    %16 = vector.load %arg7[%c0_14, %c0_15] : memref<1x128xf32, #tpu.memory_space<vmem>>, vector<1x128xf32>
    %c0_i32_16 = arith.constant 0 : i32
    %17 = arith.index_cast %c0_i32_16 : i32 to index
    %c0_17 = arith.constant 0 : index
    %18 = vector.load %arg10[%17, %c0_17] : memref<1x384xf32, #tpu.memory_space<vmem>>, vector<1x384xf32>
    %cst_18 = arith.constant dense<0.000000e+00> : vector<1x384xf32>
    %19 = tpu.matmul %16, %14, %cst_18 {dimension_numbers = #tpu.dot_dimension_numbers<[1], [0], [0], [1], [0, 0, 1, 1], [], []>} : vector<1x128xf32>, vector<128x384xf32>, vector<1x384xf32> -> vector<1x384xf32>
    %20 = vector.extract_strided_slice %18 {offsets = [0, 0], sizes = [1, 128], strides = [1, 1]} : vector<1x384xf32> to vector<1x128xf32>
    %21 = vector.extract_strided_slice %19 {offsets = [0, 0], sizes = [1, 128], strides = [1, 1]} : vector<1x384xf32> to vector<1x128xf32>
    %22 = arith.addf %20, %21 : vector<1x128xf32>
    %23 = arith.negf %22 : vector<1x128xf32>
    %24 = math.exp %23 : vector<1x128xf32>
    %cst_19 = arith.constant 1.000000e+00 : f32
    %25 = vector.broadcast %cst_19 : f32 to vector<1x128xf32>
    %26 = arith.addf %25, %24 : vector<1x128xf32>
    %27 = arith.divf %25, %26 : vector<1x128xf32>
    %28 = vector.extract_strided_slice %18 {offsets = [0, 128], sizes = [1, 128], strides = [1, 1]} : vector<1x384xf32> to vector<1x128xf32>
    %29 = vector.extract_strided_slice %19 {offsets = [0, 128], sizes = [1, 128], strides = [1, 1]} : vector<1x384xf32> to vector<1x128xf32>
    %30 = arith.addf %28, %29 : vector<1x128xf32>
    %31 = arith.negf %30 : vector<1x128xf32>
    %32 = math.exp %31 : vector<1x128xf32>
    %cst_20 = arith.constant 1.000000e+00 : f32
    %33 = vector.broadcast %cst_20 : f32 to vector<1x128xf32>
    %34 = arith.addf %33, %32 : vector<1x128xf32>
    %35 = arith.divf %33, %34 : vector<1x128xf32>
    %36 = vector.extract_strided_slice %18 {offsets = [0, 256], sizes = [1, 128], strides = [1, 1]} : vector<1x384xf32> to vector<1x128xf32>
    %37 = vector.extract_strided_slice %19 {offsets = [0, 256], sizes = [1, 128], strides = [1, 1]} : vector<1x384xf32> to vector<1x128xf32>
    %38 = arith.addf %37, %15 : vector<1x128xf32>
    %39 = arith.mulf %27, %38 : vector<1x128xf32>
    %40 = arith.addf %36, %39 : vector<1x128xf32>
    %41 = math.tanh %40 : vector<1x128xf32>
    %42 = arith.subf %16, %41 : vector<1x128xf32>
    %43 = arith.mulf %35, %42 : vector<1x128xf32>
    %44 = arith.addf %41, %43 : vector<1x128xf32>
    %45 = arith.index_cast %c0_i32_16 : i32 to index
    %c0_21 = arith.constant 0 : index
    %46 = vector.load %arg8[%45, %c0_21] : memref<1x128xf32, #tpu.memory_space<vmem>>, vector<1x128xf32>
    tpu.vector_store %arg8[%45, %c0_21], %44 {strides = array<i32>} : memref<1x128xf32, #tpu.memory_space<vmem>>, vector<1x128xf32>,
    %c1_i32_22 = arith.constant 1 : i32
    return
  }
  func.func @transform_0(%arg0: i32, %arg1: memref<1xi32, #tpu.memory_space<smem>>) -> (i32, i32) {
    %c0_i32 = arith.constant 0 : i32
    %c0_i32_0 = arith.constant 0 : i32
    %c0_i32_1 = arith.constant 0 : i32
    return %c0_i32, %c0_i32_0 : i32, i32
  }
  func.func @transform_1(%arg0: i32, %arg1: memref<1xi32, #tpu.memory_space<smem>>) -> (i32, i32) {
    %c0_i32 = arith.constant 0 : i32
    %c0_i32_0 = arith.constant 0 : i32
    %c0_i32_1 = arith.constant 0 : i32
    return %c0_i32, %c0_i32_0 : i32, i32
  }
  func.func @transform_2(%arg0: i32, %arg1: memref<1xi32, #tpu.memory_space<smem>>) -> (i32, i32) {
    %c0_i32 = arith.constant 0 : i32
    %c0_i32_0 = arith.constant 0 : i32
    %c0_i32_1 = arith.constant 0 : i32
    return %c0_i32, %c0_i32_0 : i32, i32
  }
  func.func @transform_3(%arg0: i32, %arg1: memref<1xi32, #tpu.memory_space<smem>>) -> (i32, i32) {
    %c0_i32 = arith.constant 0 : i32
    %c0_i32_0 = arith.constant 0 : i32
    %c0_i32_1 = arith.constant 0 : i32
    return %c0_i32, %c0_i32_0 : i32, i32
  }
  func.func @transform_4(%arg0: i32, %arg1: memref<1xi32, #tpu.memory_space<smem>>) -> (i32, i32) {
    %c0_i32 = arith.constant 0 : i32
    %c0_i32_0 = arith.constant 0 : i32
    %c0_i32_1 = arith.constant 0 : i32
    return %c0_i32, %c0_i32_0 : i32, i32
  }
  func.func @transform_5(%arg0: i32, %arg1: memref<1xi32, #tpu.memory_space<smem>>) -> (i32, i32) {
    %c0_i32 = arith.constant 0 : i32
    %c0_i32_0 = arith.constant 0 : i32
    %c0_i32_1 = arith.constant 0 : i32
    return %c0_i32, %c0_i32_0 : i32, i32
  }
  func.func @transform_6(%arg0: i32, %arg1: memref<1xi32, #tpu.memory_space<smem>>) -> (i32, i32) {
    %c0_i32 = arith.constant 0 : i32
    %c0_i32_0 = arith.constant 0 : i32
    %c0_i32_1 = arith.constant 0 : i32
    return %c0_i32, %c0_i32_0 : i32, i32
  }
}

</mosaic_0001>

<llo_original>
// kernel: tpu_custom_call.1
$region0: #{tpu_custom_call.1}
  #allocation0 [shape = 'u32[]', space=smem, size = 0x4, offset = 0x4, fixed_abs, tag = 'smem constant byte address 0x4 - core index']
  #allocation1 [shape = 'u32[144,128]{1,0:T(1,128)}', space=vmem, size = 0x12000, scoped, tag = 'internal scratch']
  #allocation2 [shape = 'f32[1,128]{1,0:T(1,128)}', space=vmem, size = 0x200, scoped, tag = 'scratch operand']
  #allocation3 [shape = 'f32[1,384]{1,0:T(1,128)}', space=vmem, size = 0x600, scoped, tag = 'scratch operand']
  #allocation4 [shape = 's32[1]{0}', space=sflag, size = 0x4, scoped, tag = 'scoped memory for tpu_custom_call.1']
  #allocation5 [shape = 's32[1]{0:T(128)S(6)}', space=smem, size = 0x200, scoped, tag = 'prefetched SMEM operand 0']
  %s0 = inlined_call_operand.<no memory space> [shape: s32[1], index: 0, kind: input, shape index: {}]
  %s1 = inlined_call_operand.hbm [shape: f32[64,128], index: 1, kind: input, shape index: {}]
  %s2 = inlined_call_operand.hbm [shape: f32[128,384], index: 2, kind: input, shape index: {}]
  %s3 = inlined_call_operand.hbm [shape: f32[128,384], index: 3, kind: input, shape index: {}]
  %s4 = inlined_call_operand.vmem [shape: f32[1,384], index: 4, kind: input, shape index: {}]
  %s5 = inlined_call_operand.vmem [shape: f32[1,128], index: 5, kind: input, shape index: {}]
  %s6 = inlined_call_operand.vmem [shape: f32[1,128], index: 6, kind: input, shape index: {}]
  %s7 = inlined_call_operand.hbm [shape: f32[1,128], index: 7, kind: output, shape index: {}]
  %s8 = sld [smem:[#allocation0]]
  $region46: #{tpu_custom_call.1} parent=0
    _
  %s10 = ssub.s32 1, %s8
  %s11 = scalar_select 0, %s10, %s8
  %12 = sst [smem:[#allocation5]] %s0
  $region1: #{tpu_custom_call.1} parent=0
    #allocation6 [shape = 'u8[32768]{0}', space=vmem, size = 0x8000, scoped, tag = 'input window, operand 1, single buffered']
    #allocation7 [shape = 's32[1]{0}', space=sflag, size = 0x4, scoped, tag = 'scoped memory for tpu_custom_call.1']
    #allocation8 [shape = 's32[1]{0}', space=sflag, size = 0x4, scoped, tag = 'scoped memory for tpu_custom_call.1']
    #allocation9 [shape = 'u8[196608]{0}', space=vmem, size = 0x30000, scoped, tag = 'input window, operand 2, single buffered']
    #allocation10 [shape = 's32[1]{0}', space=sflag, size = 0x4, scoped, tag = 'scoped memory for tpu_custom_call.1']
    #allocation11 [shape = 'u8[196608]{0}', space=vmem, size = 0x30000, scoped, tag = 'input window, operand 3, single buffered']
    #allocation12 [shape = 'u8[512]{0}', space=vmem, size = 0x400, scoped, tag = 'output window, operand 0, single buffered']
    %13 = vsyncpa [#allocation7], 0
    %14 = vsyncpa [#allocation10], 0
    %15 = vsyncpa [#allocation8], 0
    // Predicated region
    $region2: #{tpu_custom_call.1} parent=1 // pred_check
      _
    $region3: #{tpu_custom_call.1} parent=1 // pred_check_branch
      %17 = sbr.rel (0) target = $region5
    $region4: #{tpu_custom_call.1} parent=1 // pred_region
      %s19 = ssub.s32 1024, 1024
      %20 = vsyncadd [#allocation7], %s19
      %s21 = sshll.u32 [#allocation6], 4
      %s22 = int_to_ptr.vmem [resolvable:$true] %s21
      %27 = dma.hbm_to_vmem [thread:$0]  %s1, 1024, %s22, [#allocation7], 128, 128, 8
    $region5: #{tpu_custom_call.1} parent=1 // pred_fallthru
      _
    // Predicated region
    $region6: #{tpu_custom_call.1} parent=1 // pred_check
      _
    $region7: #{tpu_custom_call.1} parent=1 // pred_check_branch
      %29 = sbr.rel (0) target = $region9
    $region8: #{tpu_custom_call.1} parent=1 // pred_region
      %s31 = ssub.s32 6144, 6144
      %32 = vsyncadd [#allocation10], %s31
      %s33 = sshll.u32 [#allocation9], 4
      %s34 = int_to_ptr.vmem [resolvable:$true] %s33
      %39 = dma.hbm_to_vmem [thread:$0]  %s2, 6144, %s34, [#allocation10], 384, 384, 24
    $region9: #{tpu_custom_call.1} parent=1 // pred_fallthru
      _
    // Predicated region
    $region10: #{tpu_custom_call.1} parent=1 // pred_check
      _
    $region11: #{tpu_custom_call.1} parent=1 // pred_check_branch
      %41 = sbr.rel (0) target = $region13
    $region12: #{tpu_custom_call.1} parent=1 // pred_region
      %s43 = ssub.s32 6144, 6144
      %44 = vsyncadd [#allocation10], %s43
      %s45 = sshll.u32 [#allocation11], 4
      %s46 = int_to_ptr.vmem [resolvable:$true] %s45
      %51 = dma.hbm_to_vmem [thread:$0]  %s3, 6144, %s46, [#allocation10], 384, 384, 24
    $region13: #{tpu_custom_call.1} parent=1 // pred_fallthru
      _
    // Predicated region
    $region14: #{tpu_custom_call.1} parent=1 // pred_check
      _
    $region15: #{tpu_custom_call.1} parent=1 // pred_check_branch
      %53 = sbr.rel (0) target = $region17
    $region16: #{tpu_custom_call.1} parent=1 // pred_region
      _
    $region17: #{tpu_custom_call.1} parent=1 // pred_fallthru
      _
    // Predicated region
    $region18: #{tpu_custom_call.1} parent=1 // pred_check
      _
    $region19: #{tpu_custom_call.1} parent=1 // pred_check_branch
      %55 = sbr.rel (0) target = $region21
    $region20: #{tpu_custom_call.1} parent=1 // pred_region
      _
    $region21: #{tpu_custom_call.1} parent=1 // pred_fallthru
      _
    // Predicated region
    $region22: #{tpu_custom_call.1} parent=1 // pred_check
      _
    $region23: #{tpu_custom_call.1} parent=1 // pred_check_branch
      %57 = sbr.rel (0) target = $region25
    $region24: #{tpu_custom_call.1} parent=1 // pred_region
      _
    $region25: #{tpu_custom_call.1} parent=1 // pred_fallthru
      _
    // Predicated region
    $region26: #{tpu_custom_call.1} parent=1 // pred_check
      _
    $region27: #{tpu_custom_call.1} parent=1 // pred_check_branch
      %59 = sbr.rel (0) target = $region29
    $region28: #{tpu_custom_call.1} parent=1 // pred_region
      %60 = dma.done [#allocation7], 1024
    $region29: #{tpu_custom_call.1} parent=1 // pred_fallthru
      _
    // Predicated region
    $region30: #{tpu_custom_call.1} parent=1 // pred_check
      _
    $region31: #{tpu_custom_call.1} parent=1 // pred_check_branch
      %62 = sbr.rel (0) target = $region33
    $region32: #{tpu_custom_call.1} parent=1 // pred_region
      %63 = dma.done [#allocation10], 6144
    $region33: #{tpu_custom_call.1} parent=1 // pred_fallthru
      _
    // Predicated region
    $region34: #{tpu_custom_call.1} parent=1 // pred_check
      _
    $region35: #{tpu_custom_call.1} parent=1 // pred_check_branch
      %65 = sbr.rel (0) target = $region37
    $region36: #{tpu_custom_call.1} parent=1 // pred_region
      %66 = dma.done [#allocation10], 6144
    $region37: #{tpu_custom_call.1} parent=1 // pred_fallthru
      _
    %s67 = sld [smem:[#allocation5]]
    %p68 = scmp.gt.s32.totalorder %s67, 0
    %s69 = scalar_select %p68, %s67, 0
    %p70 = scmp.lt.s32.totalorder %s69, 63
    %s71 = scalar_select %p70, %s69, 63
    %s72 = scalar_lea.vmem [#allocation6], %s71
    %v73 = vld [vmem:[%s72] sm:$0x1]
    %74 = vst [vmem:[#allocation2] sm:$0x1] %v73
    %v75 = vld [vmem:[#allocation2] sm:$0x1]
    %v76 = vld [vmem:[#allocation9] sm:$0xff]
    %v77 = vld [vmem:[#allocation9 + $0x8] sm:$0xff]
    %v78 = vld [vmem:[#allocation9 + $0x10] sm:$0xff]
    %v79 = vld [vmem:[#allocation9 + $0x18] sm:$0xff]
    %v80 = vld [vmem:[#allocation9 + $0x20] sm:$0xff]
    %v81 = vld [vmem:[#allocation9 + $0x28] sm:$0xff]
    %v82 = vld [vmem:[#allocation9 + $0x30] sm:$0xff]
    %v83 = vld [vmem:[#allocation9 + $0x38] sm:$0xff]
    %v84 = vld [vmem:[#allocation9 + $0x40] sm:$0xff]
    %v85 = vld [vmem:[#allocation9 + $0x48] sm:$0xff]
    %v86 = vld [vmem:[#allocation9 + $0x50] sm:$0xff]
    %v87 = vld [vmem:[#allocation9 + $0x58] sm:$0xff]
    %v88 = vld [vmem:[#allocation9 + $0x60] sm:$0xff]
    %v89 = vld [vmem:[#allocation9 + $0x68] sm:$0xff]
    %v90 = vld [vmem:[#allocation9 + $0x70] sm:$0xff]
    %v91 = vld [vmem:[#allocation9 + $0x78] sm:$0xff]
    %v92 = vld [vmem:[#allocation9 + $0x80] sm:$0xff]
    %v93 = vld [vmem:[#allocation9 + $0x88] sm:$0xff]
    %v94 = vld [vmem:[#allocation9 + $0x90] sm:$0xff]
    %v95 = vld [vmem:[#allocation9 + $0x98] sm:$0xff]
    %v96 = vld [vmem:[#allocation9 + $0xa0] sm:$0xff]
    %v97 = vld [vmem:[#allocation9 + $0xa8] sm:$0xff]
    %v98 = vld [vmem:[#allocation9 + $0xb0] sm:$0xff]
    %v99 = vld [vmem:[#allocation9 + $0xb8] sm:$0xff]
    %v100 = vld [vmem:[#allocation9 + $0xc0] sm:$0xff]
    %v101 = vld [vmem:[#allocation9 + $0xc8] sm:$0xff]
    %v102 = vld [vmem:[#allocation9 + $0xd0] sm:$0xff]
    %v103 = vld [vmem:[#allocation9 + $0xd8] sm:$0xff]
    %v104 = vld [vmem:[#allocation9 + $0xe0] sm:$0xff]
    %v105 = vld [vmem:[#allocation9 + $0xe8] sm:$0xff]
    %v106 = vld [vmem:[#allocation9 + $0xf0] sm:$0xff]
    %v107 = vld [vmem:[#allocation9 + $0xf8] sm:$0xff]
    %v108 = vld [vmem:[#allocation9 + $0x100] sm:$0xff]
    %v109 = vld [vmem:[#allocation9 + $0x108] sm:$0xff]
    %v110 = vld [vmem:[#allocation9 + $0x110] sm:$0xff]
    %v111 = vld [vmem:[#allocation9 + $0x118] sm:$0xff]
    %v112 = vld [vmem:[#allocation9 + $0x120] sm:$0xff]
    %v113 = vld [vmem:[#allocation9 + $0x128] sm:$0xff]
    %v114 = vld [vmem:[#allocation9 + $0x130] sm:$0xff]
    %v115 = vld [vmem:[#allocation9 + $0x138] sm:$0xff]
    %v116 = vld [vmem:[#allocation9 + $0x140] sm:$0xff]
    %v117 = vld [vmem:[#allocation9 + $0x148] sm:$0xff]
    %v118 = vld [vmem:[#allocation9 + $0x150] sm:$0xff]
    %v119 = vld [vmem:[#allocation9 + $0x158] sm:$0xff]
    %v120 = vld [vmem:[#allocation9 + $0x160] sm:$0xff]
    %v121 = vld [vmem:[#allocation9 + $0x168] sm:$0xff]
    %v122 = vld [vmem:[#allocation9 + $0x170] sm:$0xff]
    %v123 = vld [vmem:[#allocation9 + $0x178] sm:$0xff]
    %v124 = vld [vmem:[%s4] sm:$0x7]
    %v126 = vlaneseq
    %v127 = vshrl.u32 %v126, 7
    %v128 = vsub.s32 0, %v127
    %v129 = vrot.slane %v124, %v128
    %v130 = vlaneseq
    %v131 = vshrl.u32 %v130, 7
    %v132 = vsub.s32 1, %v131
    %v133 = vrot.slane %v124, %v132
    %v134 = vlaneseq
    %v135 = vshrl.u32 %v134, 7
    %v136 = vsub.s32 2, %v135
    %v137 = vrot.slane %v124, %v136
    %141 = vmatprep.subr.mxu0 %v122
    %142 = vmatpush1.msra.mxu0 %v121
    %143 = vmatprep.subr.mxu0 %v119
    %144 = vmatpush1.msra.mxu0 %v118
    %145 = vmatprep.subr.mxu0 %v116
    %146 = vmatpush1.msra.mxu0 %v115
    %147 = vmatprep.subr.mxu0 %v113
    %148 = vmatpush1.msra.mxu0 %v112
    %149 = vmatprep.subr.mxu0 %v110
    %150 = vmatpush1.msra.mxu0 %v109
    %151 = vmatprep.subr.mxu0 %v107
    %152 = vmatpush1.msra.mxu0 %v106
    %153 = vmatprep.subr.mxu0 %v104
    %154 = vmatpush1.msra.mxu0 %v103
    %155 = vmatprep.subr.mxu0 %v101
    %156 = vmatpush1.msra.mxu0 %v100
    %157 = vmatprep.subr.mxu0 %v98
    %158 = vmatpush1.msra.mxu0 %v97
    %159 = vmatprep.subr.mxu0 %v95
    %160 = vmatpush1.msra.mxu0 %v94
    %161 = vmatprep.subr.mxu0 %v92
    %162 = vmatpush1.msra.mxu0 %v91
    %163 = vmatprep.subr.mxu0 %v89
    %164 = vmatpush1.msra.mxu0 %v88
    %165 = vmatprep.subr.mxu0 %v86
    %166 = vmatpush1.msra.mxu0 %v85
    %167 = vmatprep.subr.mxu0 %v83
    %168 = vmatpush1.msra.mxu0 %v82
    %169 = vmatprep.subr.mxu0 %v80
    %170 = vmatpush1.msra.mxu0 %v79
    %171 = vmatprep.subr.mxu0 %v77
    %172 = vmatpush1.msra.mxu0 %v76
    %173 = vmatprep.subr.mxu0 0.0
    %174 = vmatpush2.msra.mxu0 0.0
    %175 = vmatprep.subr.mxu0 0.0
    %176 = vmatpush2.msra.mxu0 0.0
    %177 = vmatprep.subr.mxu0 0.0
    %178 = vmatpush2.msra.mxu0 0.0
    %179 = vmatprep.subr.mxu0 0.0
    %180 = vmatpush2.msra.mxu0 0.0
    %181 = vmatprep.subr.mxu0 0.0
    %182 = vmatpush2.msra.mxu0 0.0
    %183 = vmatprep.subr.mxu0 0.0
    %184 = vmatpush2.msra.mxu0 0.0
    %185 = vmatprep.subr.mxu0 0.0
    %186 = vmatpush2.msra.mxu0 0.0
    %187 = vmatprep.subr.mxu0 0.0
    %188 = vmatpush2.msra.mxu0 0.0
    %189 = vmatprep.subr.mxu0 0.0
    %190 = vmatpush2.msra.mxu0 0.0
    %191 = vmatprep.subr.mxu0 0.0
    %192 = vmatpush2.msra.mxu0 0.0
    %193 = vmatprep.subr.mxu0 0.0
    %194 = vmatpush2.msra.mxu0 0.0
    %195 = vmatprep.subr.mxu0 0.0
    %196 = vmatpush2.msra.mxu0 0.0
    %197 = vmatprep.subr.mxu0 0.0
    %198 = vmatpush2.msra.mxu0 0.0
    %199 = vmatprep.subr.mxu0 0.0
    %200 = vmatpush2.msra.mxu0 0.0
    %201 = vmatprep.subr.mxu0 0.0
    %202 = vmatpush2.msra.mxu0 0.0
    %203 = vmatprep.subr.mxu0 0.0
    %204 = vmatpush2.msra.mxu0 0.0
    %205 = vmatprep.mubr.f32.mxu0 0.0
    %206 = vmatmul.mubr.f32.gmra.mxu0 %v75
    %v207 = vpop.f32.mrf.mxu0
    %v208 = vadd.f32 %v129, %v207
    %v209 = vpop.f32.mrf.mxu0
    %v210 = vadd.f32 %v133, %v209
    %211 = vdwg.mxu0
    %212 = vmatprep.subr.mxu0 0.0
    %213 = vmatpush1.msra.mxu0 %v123
    %214 = vmatprep.subr.mxu0 0.0
    %215 = vmatpush1.msra.mxu0 %v120
    %216 = vmatprep.subr.mxu0 0.0
    %217 = vmatpush1.msra.mxu0 %v117
    %218 = vmatprep.subr.mxu0 0.0
    %219 = vmatpush1.msra.mxu0 %v114
    %220 = vmatprep.subr.mxu0 0.0
    %221 = vmatpush1.msra.mxu0 %v111
    %222 = vmatprep.subr.mxu0 0.0
    %223 = vmatpush1.msra.mxu0 %v108
    %224 = vmatprep.subr.mxu0 0.0
    %225 = vmatpush1.msra.mxu0 %v105
    %226 = vmatprep.subr.mxu0 0.0
    %227 = vmatpush1.msra.mxu0 %v102
    %228 = vmatprep.subr.mxu0 0.0
    %229 = vmatpush1.msra.mxu0 %v99
    %230 = vmatprep.subr.mxu0 0.0
    %231 = vmatpush1.msra.mxu0 %v96
    %232 = vmatprep.subr.mxu0 0.0
    %233 = vmatpush1.msra.mxu0 %v93
    %234 = vmatprep.subr.mxu0 0.0
    %235 = vmatpush1.msra.mxu0 %v90
    %236 = vmatprep.subr.mxu0 0.0
    %237 = vmatpush1.msra.mxu0 %v87
    %238 = vmatprep.subr.mxu0 0.0
    %239 = vmatpush1.msra.mxu0 %v84
    %240 = vmatprep.subr.mxu0 0.0
    %241 = vmatpush1.msra.mxu0 %v81
    %242 = vmatprep.subr.mxu0 0.0
    %243 = vmatpush1.msra.mxu0 %v78
    %244 = vmatprep.subr.mxu0 0.0
    %245 = vmatpush2.msra.mxu0 0.0
    %246 = vmatprep.subr.mxu0 0.0
    %247 = vmatpush2.msra.mxu0 0.0
    %248 = vmatprep.subr.mxu0 0.0
    %249 = vmatpush2.msra.mxu0 0.0
    %250 = vmatprep.subr.mxu0 0.0
    %251 = vmatpush2.msra.mxu0 0.0
    %252 = vmatprep.subr.mxu0 0.0
    %253 = vmatpush2.msra.mxu0 0.0
    %254 = vmatprep.subr.mxu0 0.0
    %255 = vmatpush2.msra.mxu0 0.0
    %256 = vmatprep.subr.mxu0 0.0
    %257 = vmatpush2.msra.mxu0 0.0
    %258 = vmatprep.subr.mxu0 0.0
    %259 = vmatpush2.msra.mxu0 0.0
    %260 = vmatprep.subr.mxu0 0.0
    %261 = vmatpush2.msra.mxu0 0.0
    %262 = vmatprep.subr.mxu0 0.0
    %263 = vmatpush2.msra.mxu0 0.0
    %264 = vmatprep.subr.mxu0 0.0
    %265 = vmatpush2.msra.mxu0 0.0
    %266 = vmatprep.subr.mxu0 0.0
    %267 = vmatpush2.msra.mxu0 0.0
    %268 = vmatprep.subr.mxu0 0.0
    %269 = vmatpush2.msra.mxu0 0.0
    %270 = vmatprep.subr.mxu0 0.0
    %271 = vmatpush2.msra.mxu0 0.0
    %272 = vmatprep.subr.mxu0 0.0
    %273 = vmatpush2.msra.mxu0 0.0
    %274 = vmatprep.subr.mxu0 0.0
    %275 = vmatpush2.msra.mxu0 0.0
    %276 = vmatprep.mubr.f32.mxu0 0.0
    %277 = vmatmul.mubr.f32.gmra.mxu0 %v75
    %v278 = vpop.f32.mrf.mxu0
    %v279 = vadd.f32 %v137, %v278
    %v280 = vpop.f32.mrf.mxu0
    %281 = vdwg.mxu0
    %v285 = vcombine.low %v208, %v210
    %v287 = vunpack.c.l.s4 1966171168
    %v288 = vunpack.c.0.s8 %v287
    %v289 = vlaneseq
    %v290 = vshrl.u32 %v289, 7
    %v291 = vsub.s32 %v288, %v290
    %v292 = vrot.slane %v285, %v291
    %v294 = vunpack.c.l.s4 1966171168
    %v295 = vunpack.c.0.s8 %v294
    %v296 = vlaneseq
    %v297 = vshrl.u32 %v296, 7
    %v298 = vsub.s32 %v295, %v297
    %v299 = vrot.slane %v279, %v298
    %v300 = vcombine.low %v292, %v299
    %v302 = vunpack.c.l.s4 1966171168
    %v303 = vunpack.c.0.s8 %v302
    %v304 = vlaneseq
    %v305 = vshrl.u32 %v304, 7
    %v306 = vsub.s32 %v303, %v305
    %v307 = vrot.slane %v300, %v306
    %v309 = vlaneseq
    %vm310 = vcmp.ge.s32.totalorder %v309, 0
    %vm311 = vcmp.lt.s32.totalorder %v309, 384
    %vm312 = vmand %vm310, %vm311
    %313 = vst.msk [vmem:[#allocation3] sm:$0x7] %vm312, %v307
    %v314 = vld [vmem:[#allocation11] sm:$0xff]
    %v315 = vld [vmem:[#allocation11 + $0x8] sm:$0xff]
    %v316 = vld [vmem:[#allocation11 + $0x10] sm:$0xff]
    %v317 = vld [vmem:[#allocation11 + $0x18] sm:$0xff]
    %v318 = vld [vmem:[#allocation11 + $0x20] sm:$0xff]
    %v319 = vld [vmem:[#allocation11 + $0x28] sm:$0xff]
    %v320 = vld [vmem:[#allocation11 + $0x30] sm:$0xff]
    %v321 = vld [vmem:[#allocation11 + $0x38] sm:$0xff]
    %v322 = vld [vmem:[#allocation11 + $0x40] sm:$0xff]
    %v323 = vld [vmem:[#allocation11 + $0x48] sm:$0xff]
    %v324 = vld [vmem:[#allocation11 + $0x50] sm:$0xff]
    %v325 = vld [vmem:[#allocation11 + $0x58] sm:$0xff]
    %v326 = vld [vmem:[#allocation11 + $0x60] sm:$0xff]
    %v327 = vld [vmem:[#allocation11 + $0x68] sm:$0xff]
    %v328 = vld [vmem:[#allocation11 + $0x70] sm:$0xff]
    %v329 = vld [vmem:[#allocation11 + $0x78] sm:$0xff]
    %v330 = vld [vmem:[#allocation11 + $0x80] sm:$0xff]
    %v331 = vld [vmem:[#allocation11 + $0x88] sm:$0xff]
    %v332 = vld [vmem:[#allocation11 + $0x90] sm:$0xff]
    %v333 = vld [vmem:[#allocation11 + $0x98] sm:$0xff]
    %v334 = vld [vmem:[#allocation11 + $0xa0] sm:$0xff]
    %v335 = vld [vmem:[#allocation11 + $0xa8] sm:$0xff]
    %v336 = vld [vmem:[#allocation11 + $0xb0] sm:$0xff]
    %v337 = vld [vmem:[#allocation11 + $0xb8] sm:$0xff]
    %v338 = vld [vmem:[#allocation11 + $0xc0] sm:$0xff]
    %v339 = vld [vmem:[#allocation11 + $0xc8] sm:$0xff]
    %v340 = vld [vmem:[#allocation11 + $0xd0] sm:$0xff]
    %v341 = vld [vmem:[#allocation11 + $0xd8] sm:$0xff]
    %v342 = vld [vmem:[#allocation11 + $0xe0] sm:$0xff]
    %v343 = vld [vmem:[#allocation11 + $0xe8] sm:$0xff]
    %v344 = vld [vmem:[#allocation11 + $0xf0] sm:$0xff]
    %v345 = vld [vmem:[#allocation11 + $0xf8] sm:$0xff]
    %v346 = vld [vmem:[#allocation11 + $0x100] sm:$0xff]
    %v347 = vld [vmem:[#allocation11 + $0x108] sm:$0xff]
    %v348 = vld [vmem:[#allocation11 + $0x110] sm:$0xff]
    %v349 = vld [vmem:[#allocation11 + $0x118] sm:$0xff]
    %v350 = vld [vmem:[#allocation11 + $0x120] sm:$0xff]
    %v351 = vld [vmem:[#allocation11 + $0x128] sm:$0xff]
    %v352 = vld [vmem:[#allocation11 + $0x130] sm:$0xff]
    %v353 = vld [vmem:[#allocation11 + $0x138] sm:$0xff]
    %v354 = vld [vmem:[#allocation11 + $0x140] sm:$0xff]
    %v355 = vld [vmem:[#allocation11 + $0x148] sm:$0xff]
    %v356 = vld [vmem:[#allocation11 + $0x150] sm:$0xff]
    %v357 = vld [vmem:[#allocation11 + $0x158] sm:$0xff]
    %v358 = vld [vmem:[#allocation11 + $0x160] sm:$0xff]
    %v359 = vld [vmem:[#allocation11 + $0x168] sm:$0xff]
    %v360 = vld [vmem:[#allocation11 + $0x170] sm:$0xff]
    %v361 = vld [vmem:[#allocation11 + $0x178] sm:$0xff]
    %v362 = vld [vmem:[%s5] sm:$0x1]
    %v363 = vld [vmem:[%s6] sm:$0x1]
    %v364 = vld [vmem:[#allocation3] sm:$0x7]
    %365 = vmatprep.subr.mxu0 %v360
    %366 = vmatpush1.msra.mxu0 %v359
    %367 = vmatprep.subr.mxu0 %v357
    %368 = vmatpush1.msra.mxu0 %v356
    %369 = vmatprep.subr.mxu0 %v354
    %370 = vmatpush1.msra.mxu0 %v353
    %371 = vmatprep.subr.mxu0 %v351
    %372 = vmatpush1.msra.mxu0 %v350
    %373 = vmatprep.subr.mxu0 %v348
    %374 = vmatpush1.msra.mxu0 %v347
    %375 = vmatprep.subr.mxu0 %v345
    %376 = vmatpush1.msra.mxu0 %v344
    %377 = vmatprep.subr.mxu0 %v342
    %378 = vmatpush1.msra.mxu0 %v341
    %379 = vmatprep.subr.mxu0 %v339
    %380 = vmatpush1.msra.mxu0 %v338
    %381 = vmatprep.subr.mxu0 %v336
    %382 = vmatpush1.msra.mxu0 %v335
    %383 = vmatprep.subr.mxu0 %v333
    %384 = vmatpush1.msra.mxu0 %v332
    %385 = vmatprep.subr.mxu0 %v330
    %386 = vmatpush1.msra.mxu0 %v329
    %387 = vmatprep.subr.mxu0 %v327
    %388 = vmatpush1.msra.mxu0 %v326
    %389 = vmatprep.subr.mxu0 %v324
    %390 = vmatpush1.msra.mxu0 %v323
    %391 = vmatprep.subr.mxu0 %v321
    %392 = vmatpush1.msra.mxu0 %v320
    %393 = vmatprep.subr.mxu0 %v318
    %394 = vmatpush1.msra.mxu0 %v317
    %395 = vmatprep.subr.mxu0 %v315
    %396 = vmatpush1.msra.mxu0 %v314
    %397 = vmatprep.subr.mxu0 0.0
    %398 = vmatpush2.msra.mxu0 0.0
    %399 = vmatprep.subr.mxu0 0.0
    %400 = vmatpush2.msra.mxu0 0.0
    %401 = vmatprep.subr.mxu0 0.0
    %402 = vmatpush2.msra.mxu0 0.0
    %403 = vmatprep.subr.mxu0 0.0
    %404 = vmatpush2.msra.mxu0 0.0
    %405 = vmatprep.subr.mxu0 0.0
    %406 = vmatpush2.msra.mxu0 0.0
    %407 = vmatprep.subr.mxu0 0.0
    %408 = vmatpush2.msra.mxu0 0.0
    %409 = vmatprep.subr.mxu0 0.0
    %410 = vmatpush2.msra.mxu0 0.0
    %411 = vmatprep.subr.mxu0 0.0
    %412 = vmatpush2.msra.mxu0 0.0
    %413 = vmatprep.subr.mxu0 0.0
    %414 = vmatpush2.msra.mxu0 0.0
    %415 = vmatprep.subr.mxu0 0.0
    %416 = vmatpush2.msra.mxu0 0.0
    %417 = vmatprep.subr.mxu0 0.0
    %418 = vmatpush2.msra.mxu0 0.0
    %419 = vmatprep.subr.mxu0 0.0
    %420 = vmatpush2.msra.mxu0 0.0
    %421 = vmatprep.subr.mxu0 0.0
    %422 = vmatpush2.msra.mxu0 0.0
    %423 = vmatprep.subr.mxu0 0.0
    %424 = vmatpush2.msra.mxu0 0.0
    %425 = vmatprep.subr.mxu0 0.0
    %426 = vmatpush2.msra.mxu0 0.0
    %427 = vmatprep.subr.mxu0 0.0
    %428 = vmatpush2.msra.mxu0 0.0
    %429 = vmatprep.mubr.f32.mxu0 0.0
    %430 = vmatmul.mubr.f32.gmra.mxu0 %v363
    %v431 = vpop.f32.mrf.mxu0
    %v432 = vadd.f32 0.0, %v431
    %v433 = vpop.f32.mrf.mxu0
    %v434 = vadd.f32 0.0, %v433
    %435 = vdwg.mxu0
    %436 = vmatprep.subr.mxu0 0.0
    %437 = vmatpush1.msra.mxu0 %v361
    %438 = vmatprep.subr.mxu0 0.0
    %439 = vmatpush1.msra.mxu0 %v358
    %440 = vmatprep.subr.mxu0 0.0
    %441 = vmatpush1.msra.mxu0 %v355
    %442 = vmatprep.subr.mxu0 0.0
    %443 = vmatpush1.msra.mxu0 %v352
    %444 = vmatprep.subr.mxu0 0.0
    %445 = vmatpush1.msra.mxu0 %v349
    %446 = vmatprep.subr.mxu0 0.0
    %447 = vmatpush1.msra.mxu0 %v346
    %448 = vmatprep.subr.mxu0 0.0
    %449 = vmatpush1.msra.mxu0 %v343
    %450 = vmatprep.subr.mxu0 0.0
    %451 = vmatpush1.msra.mxu0 %v340
    %452 = vmatprep.subr.mxu0 0.0
    %453 = vmatpush1.msra.mxu0 %v337
    %454 = vmatprep.subr.mxu0 0.0
    %455 = vmatpush1.msra.mxu0 %v334
    %456 = vmatprep.subr.mxu0 0.0
    %457 = vmatpush1.msra.mxu0 %v331
    %458 = vmatprep.subr.mxu0 0.0
    %459 = vmatpush1.msra.mxu0 %v328
    %460 = vmatprep.subr.mxu0 0.0
    %461 = vmatpush1.msra.mxu0 %v325
    %462 = vmatprep.subr.mxu0 0.0
    %463 = vmatpush1.msra.mxu0 %v322
    %464 = vmatprep.subr.mxu0 0.0
    %465 = vmatpush1.msra.mxu0 %v319
    %466 = vmatprep.subr.mxu0 0.0
    %467 = vmatpush1.msra.mxu0 %v316
    %468 = vmatprep.subr.mxu0 0.0
    %469 = vmatpush2.msra.mxu0 0.0
    %470 = vmatprep.subr.mxu0 0.0
    %471 = vmatpush2.msra.mxu0 0.0
    %472 = vmatprep.subr.mxu0 0.0
    %473 = vmatpush2.msra.mxu0 0.0
    %474 = vmatprep.subr.mxu0 0.0
    %475 = vmatpush2.msra.mxu0 0.0
    %476 = vmatprep.subr.mxu0 0.0
    %477 = vmatpush2.msra.mxu0 0.0
    %478 = vmatprep.subr.mxu0 0.0
    %479 = vmatpush2.msra.mxu0 0.0
    %480 = vmatprep.subr.mxu0 0.0
    %481 = vmatpush2.msra.mxu0 0.0
    %482 = vmatprep.subr.mxu0 0.0
    %483 = vmatpush2.msra.mxu0 0.0
    %484 = vmatprep.subr.mxu0 0.0
    %485 = vmatpush2.msra.mxu0 0.0
    %486 = vmatprep.subr.mxu0 0.0
    %487 = vmatpush2.msra.mxu0 0.0
    %488 = vmatprep.subr.mxu0 0.0
    %489 = vmatpush2.msra.mxu0 0.0
    %490 = vmatprep.subr.mxu0 0.0
    %491 = vmatpush2.msra.mxu0 0.0
    %492 = vmatprep.subr.mxu0 0.0
    %493 = vmatpush2.msra.mxu0 0.0
    %494 = vmatprep.subr.mxu0 0.0
    %495 = vmatpush2.msra.mxu0 0.0
    %496 = vmatprep.subr.mxu0 0.0
    %497 = vmatpush2.msra.mxu0 0.0
    %498 = vmatprep.subr.mxu0 0.0
    %499 = vmatpush2.msra.mxu0 0.0
    %500 = vmatprep.mubr.f32.mxu0 0.0
    %501 = vmatmul.mubr.f32.gmra.mxu0 %v363
    %v502 = vpop.f32.mrf.mxu0
    %v503 = vadd.f32 0.0, %v502
    %v504 = vpop.f32.mrf.mxu0
    %505 = vdwg.mxu0
    %v506 = vadd.f32 %v364, %v432
    %v507 = vxor.u32 %v506, 2147483648
    %v508 = vmul.f32 %v507, 1.442695
    %v509 = vpow.pop %v508
    %v510 = vadd.f32 %v509, 1.0
    %v511 = vrcp.pop %v510
    %v512 = vmul.f32 1.0, %v511
    %v514 = vrot.slane %v364, 1
    %v516 = vadd.f32 %v514, %v434
    %v517 = vxor.u32 %v516, 2147483648
    %v518 = vmul.f32 %v517, 1.442695
    %v519 = vpow.pop %v518
    %v520 = vadd.f32 %v519, 1.0
    %v521 = vrcp.pop %v520
    %v522 = vmul.f32 1.0, %v521
    %v523 = vadd.f32 %v503, %v362
    %v524 = vmul.f32 %v512, %v523
    %v525 = vrot.slane %v364, 2
    %v527 = vadd.f32 %v525, %v524
    %v528 = vtanh.pop %v527
    %v529 = vsub.f32 %v363, %v528
    %v530 = vmul.f32 %v522, %v529
    %v531 = vadd.f32 %v528, %v530
    %532 = vst [vmem:[#allocation12] sm:$0x1] %v531
    // Predicated region
    $region38: #{tpu_custom_call.1} parent=1 // pred_check
      _
    $region39: #{tpu_custom_call.1} parent=1 // pred_check_branch
      %534 = sbr.rel (0) target = $region41
    $region40: #{tpu_custom_call.1} parent=1 // pred_region
      %s536 = ssub.s32 16, 16
      %537 = vsyncadd [#allocation8], %s536
      %s539 = sshll.u32 [#allocation12], 4
      %s540 = int_to_ptr.vmem [resolvable:$true] %s539
      %542 = dma.vmem_to_hbm [thread:$0]  %s540, 16, %s7, [#allocation8]
    $region41: #{tpu_custom_call.1} parent=1 // pred_fallthru
      _
    // Predicated region
    $region42: #{tpu_custom_call.1} parent=1 // pred_check
      _
    $region43: #{tpu_custom_call.1} parent=1 // pred_check_branch
      %544 = sbr.rel (0) target = $region45
    $region44: #{tpu_custom_call.1} parent=1 // pred_region
      %545 = dma.done [#allocation8], 16
    $region45: #{tpu_custom_call.1} parent=1 // pred_fallthru
      _
    %546 = vsyncpa [#allocation7], 1
    %547 = vsyncpa [#allocation10], 1
    %548 = vsyncpa [#allocation8], 1

</llo_original>
